<compile_context>
chip_gen: v7x
topology: tpu7x:2x2x1
jax: 0.10.0
libtpu: 0.0.40
codegen_flags: <defaults>
</compile_context>

<pallas_src>
import jax
import jax.numpy as jnp
from jax.experimental import pallas as pl
from jax.experimental.pallas import tpu as pltpu


def _booster_kernel(x_ref, w_ref, o_ref):
    # x_ref : (Bt, F)            F = sqrt_d * block_size  (lane-dense)
    # w_ref : (sqrt_d, F)
    # o_ref : (Bt, sqrt_d, F)
    x = x_ref[...]                       # (Bt, F)
    w = w_ref[...]                       # (sqrt_d, F)
    # out[b, r, f] = w[r, f] * x[b, f]   (sublane broadcast of x over r)
    o_ref[...] = (x[:, None, :] * w[None, :, :]).astype(o_ref.dtype)


def _pick_bt(batch_size, bt=None, cap=256):
    """Rows per grid step.  Must equal batch_size or be a multiple of 8 so the
    (Bt, F) input block obeys the (8, 128) minor-dims tiling rule."""
    if bt is None:
        bt = min(batch_size, cap)
    bt = min(bt, batch_size)
    if bt != batch_size and bt % 8 != 0:
        bt = max(8, (bt // 8) * 8)
    return bt


def booster_forward(x, weights, *, batch_size, sqrt_d, block_size,
                    bt=None, flat_output=False):
    """x: any shape with batch_size*sqrt_d*block_size elements (e.g. (B, T, sqrt(C)))."""
    n_embd = sqrt_d * sqrt_d
    flat = sqrt_d * block_size           # 1024: lane-dense minor axis

    # Row-major reinterprets (same bytes as the torch .view calls).
    x_flat = jnp.reshape(x, (batch_size, flat))
    w_flat = jnp.reshape(weights, (sqrt_d, flat))

    bt = _pick_bt(batch_size, bt)
    grid = (pl.cdiv(batch_size, bt),)

    out = pl.pallas_call(
        _booster_kernel,
        out_shape=jax.ShapeDtypeStruct((batch_size, sqrt_d, flat), x.dtype),
        grid_spec=pltpu.PrefetchScalarGridSpec(
            num_scalar_prefetch=0,
            grid=grid,
            in_specs=[
                pl.BlockSpec((bt, flat), lambda b: (b, 0)),
                # Grid-invariant weights: every step maps to block (0, 0).
                pl.BlockSpec((sqrt_d, flat), lambda b: (0, 0)),
            ],
            out_specs=pl.BlockSpec((bt, sqrt_d, flat), lambda b: (b, 0, 0)),
        ),
        compiler_params=pltpu.CompilerParams(
            dimension_semantics=("parallel",),
            # 2x(in block) + 2x(out block) + 2x(weights) ~= 18 MiB at Bt=256,
            # plus headroom; explicit so it also clears v5e's 16 MiB default.
            vmem_limit_bytes=40 * 1024 * 1024,
        ),
    )(x_flat, w_flat)

    if flat_output:
        # Lane-dense slab (B, sqrt_d, sqrt_d*block_size): same bytes as the
        # module output; lets a downstream consumer skip the relayout to the
        # 64-wide minor dim.
        return out
    # PyTorch: .view(-1, block_size).view(B, block_size, n_embd) -- row-major.
    return jnp.reshape(out, (batch_size, block_size, n_embd))


def booster_reference(x, weights, *, batch_size, sqrt_d, block_size):
    n_embd = sqrt_d * sqrt_d
    x_r = jnp.reshape(x, (batch_size, sqrt_d, block_size))
    revived = weights[None, :, :, :] * x_r[:, None, :, :]
    return jnp.reshape(revived, (batch_size, block_size, n_embd))


if __name__ == "__main__":
    # Shapes consistent with the module: n_embd = 64 -> sqrt_d = 8,
    # block_size (seq len T) = 128.
    sqrt_d = 8
    block_size = 128
    n_embd = sqrt_d * sqrt_d

    key = jax.random.PRNGKey(0)
    k_w, k_x1, k_x2 = jax.random.split(key, 3)

    # nn.Parameter(torch.randn(sqrt_d, sqrt_d, block_size)) -- deterministic init.
    weights = jax.random.normal(k_w, (sqrt_d, sqrt_d, block_size), dtype=jnp.float32)

    # Case 1: module-default tiny shape (B, T, sqrt(C)) = (2, 128, 8); one grid step.
    b1 = 2
    x1 = jax.random.normal(k_x1, (b1, block_size, sqrt_d), dtype=jnp.float32)
    out1 = jax.block_until_ready(
        booster_forward(x1, weights, batch_size=b1, sqrt_d=sqrt_d,
                        block_size=block_size))
    ref1 = booster_reference(x1, weights, batch_size=b1, sqrt_d=sqrt_d,
                             block_size=block_size)
    assert out1.shape == (b1, block_size, n_embd)
    assert jnp.allclose(out1, ref1, atol=1e-6, rtol=1e-6)

    # Case 2: exercise the batched multi-step grid (2 steps of Bt=8 rows).
    b2 = 16
    x2 = jax.random.normal(k_x2, (b2, block_size, sqrt_d), dtype=jnp.float32)
    out2 = jax.block_until_ready(
        booster_forward(x2, weights, batch_size=b2, sqrt_d=sqrt_d,
                        block_size=block_size, bt=8))
    ref2 = booster_reference(x2, weights, batch_size=b2, sqrt_d=sqrt_d,
                             block_size=block_size)
    assert out2.shape == (b2, block_size, n_embd)
    assert jnp.allclose(out2, ref2, atol=1e-6, rtol=1e-6)

    print("KERNEL_OK")
</pallas_src>

<mosaic_0001>
module attributes {stable_mosaic.version = 11 : i64} {
  func.func @_booster_kernel(%arg0: i32, %arg1: memref<2x1024xf32, #tpu.memory_space<vmem>>, %arg2: memref<8x1024xf32, #tpu.memory_space<vmem>>, %arg3: memref<2x8x1024xf32, #tpu.memory_space<vmem>>) attributes {dimension_semantics = [#tpu.dimension_semantics<parallel>], iteration_bounds = array<i64: 1>, scalar_prefetch = 0 : i64, scratch_operands = 0 : i64, tpu.core_type = #tpu.core_type<tc>, window_params = [{transform_indices = @transform_0, window_bounds = array<i64: 2, 1024>}, {pipeline_mode = #tpu.pipeline_mode<synchronous>, transform_indices = @transform_1, window_bounds = array<i64: 8, 1024>}, {transform_indices = @transform_2, window_bounds = array<i64: 2, 8, 1024>}]} {
    %c0 = arith.constant 0 : index
    %c0_0 = arith.constant 0 : index
    %0 = vector.load %arg1[%c0, %c0_0] : memref<2x1024xf32, #tpu.memory_space<vmem>>, vector<2x1024xf32>
    %c0_1 = arith.constant 0 : index
    %c0_2 = arith.constant 0 : index
    %1 = vector.load %arg2[%c0_1, %c0_2] : memref<8x1024xf32, #tpu.memory_space<vmem>>, vector<8x1024xf32>
    %2 = vector.shape_cast %0 : vector<2x1024xf32> to vector<2x1x1024xf32>
    %3 = vector.shape_cast %1 : vector<8x1024xf32> to vector<1x8x1024xf32>
    %4 = vector.broadcast %2 : vector<2x1x1024xf32> to vector<2x8x1024xf32>
    %5 = vector.broadcast %3 : vector<1x8x1024xf32> to vector<2x8x1024xf32>
    %6 = arith.mulf %4, %5 : vector<2x8x1024xf32>
    %c0_3 = arith.constant 0 : index
    %c0_4 = arith.constant 0 : index
    %c0_5 = arith.constant 0 : index
    %7 = vector.load %arg3[%c0_3, %c0_4, %c0_5] : memref<2x8x1024xf32, #tpu.memory_space<vmem>>, vector<2x8x1024xf32>
    tpu.vector_store %arg3[%c0_3, %c0_4, %c0_5], %6 {strides = array<i32>} : memref<2x8x1024xf32, #tpu.memory_space<vmem>>, vector<2x8x1024xf32>,
    return
  }
  func.func @transform_0(%arg0: i32) -> (i32, i32) {
    %c0_i32 = arith.constant 0 : i32
    %c0_i32_0 = arith.constant 0 : i32
    return %arg0, %c0_i32 : i32, i32
  }
  func.func @transform_1(%arg0: i32) -> (i32, i32) {
    %c0_i32 = arith.constant 0 : i32
    %c0_i32_0 = arith.constant 0 : i32
    %c0_i32_1 = arith.constant 0 : i32
    return %c0_i32, %c0_i32_0 : i32, i32
  }
  func.func @transform_2(%arg0: i32) -> (i32, i32, i32) {
    %c0_i32 = arith.constant 0 : i32
    %c0_i32_0 = arith.constant 0 : i32
    %c0_i32_1 = arith.constant 0 : i32
    return %arg0, %c0_i32, %c0_i32_0 : i32, i32, i32
  }
}

</mosaic_0001>

<llo_original>
// kernel: tpu_custom_call.1
$region0: #{tpu_custom_call.1}
  #allocation0 [shape = 'u32[]', space=smem, size = 0x4, offset = 0x4, fixed_abs, tag = 'smem constant byte address 0x4 - core index']
  #allocation1 [shape = 'u32[144,128]{1,0:T(1,128)}', space=vmem, size = 0x12000, scoped, tag = 'internal scratch']
  %s0 = inlined_call_operand.hbm [shape: f32[2,1024], index: 0, kind: input, shape index: {}]
  %s1 = inlined_call_operand.hbm [shape: f32[8,1024], index: 1, kind: input, shape index: {}]
  %s2 = inlined_call_operand.hbm [shape: f32[2,8,1024], index: 2, kind: output, shape index: {}]
  %s3 = sld [smem:[#allocation0]]
  $region26: #{tpu_custom_call.1} parent=0
    _
  %s5 = ssub.s32 1, %s3
  %s6 = scalar_select 0, %s5, %s3
  $region1: #{tpu_custom_call.1} parent=0
    #allocation2 [shape = 'u8[8192]{0}', space=vmem, size = 0x2000, scoped, tag = 'input window, operand 0, single buffered']
    #allocation3 [shape = 's32[1]{0}', space=sflag, size = 0x4, scoped, tag = 'scoped memory for tpu_custom_call.1']
    #allocation4 [shape = 's32[1]{0}', space=sflag, size = 0x4, scoped, tag = 'scoped memory for tpu_custom_call.1']
    #allocation5 [shape = 'u8[32768]{0}', space=vmem, size = 0x8000, scoped, tag = 'input window, operand 1, single buffered']
    #allocation6 [shape = 's32[1]{0}', space=sflag, size = 0x4, scoped, tag = 'scoped memory for tpu_custom_call.1']
    #allocation7 [shape = 'u8[65536]{0}', space=vmem, size = 0x10000, scoped, tag = 'output window, operand 0, single buffered']
    %7 = vsyncpa [#allocation3], 0
    %8 = vsyncpa [#allocation6], 0
    %9 = vsyncpa [#allocation4], 0
    // Predicated region
    $region2: #{tpu_custom_call.1} parent=1 // pred_check
      _
    $region3: #{tpu_custom_call.1} parent=1 // pred_check_branch
      %11 = sbr.rel (0) target = $region5
    $region4: #{tpu_custom_call.1} parent=1 // pred_region
      %s13 = ssub.s32 256, 256
      %14 = vsyncadd [#allocation3], %s13
      %s16 = sshll.u32 [#allocation2], 4
      %s17 = int_to_ptr.vmem [resolvable:$true] %s16
      %19 = dma.hbm_to_vmem [thread:$0]  %s0, 256, %s17, [#allocation3]
    $region5: #{tpu_custom_call.1} parent=1 // pred_fallthru
      _
    // Predicated region
    $region6: #{tpu_custom_call.1} parent=1 // pred_check
      _
    $region7: #{tpu_custom_call.1} parent=1 // pred_check_branch
      %21 = sbr.rel (0) target = $region9
    $region8: #{tpu_custom_call.1} parent=1 // pred_region
      %s23 = ssub.s32 1024, 1024
      %24 = vsyncadd [#allocation6], %s23
      %s26 = sshll.u32 [#allocation5], 4
      %s27 = int_to_ptr.vmem [resolvable:$true] %s26
      %29 = dma.hbm_to_vmem [thread:$0]  %s1, 1024, %s27, [#allocation6]
    $region9: #{tpu_custom_call.1} parent=1 // pred_fallthru
      _
    // Predicated region
    $region10: #{tpu_custom_call.1} parent=1 // pred_check
      _
    $region11: #{tpu_custom_call.1} parent=1 // pred_check_branch
      %31 = sbr.rel (0) target = $region13
    $region12: #{tpu_custom_call.1} parent=1 // pred_region
      %32 = dma.done [#allocation3], 256
    $region13: #{tpu_custom_call.1} parent=1 // pred_fallthru
      _
    // Predicated region
    $region14: #{tpu_custom_call.1} parent=1 // pred_check
      _
    $region15: #{tpu_custom_call.1} parent=1 // pred_check_branch
      %34 = sbr.rel (0) target = $region17
    $region16: #{tpu_custom_call.1} parent=1 // pred_region
      %35 = dma.done [#allocation6], 1024
    $region17: #{tpu_custom_call.1} parent=1 // pred_fallthru
      _
    %v36 = vld [vmem:[#allocation2] sm:$0xff]
    %v37 = vld [vmem:[#allocation2 + $0x8] sm:$0xff]
    %v38 = vld [vmem:[#allocation5] sm:$0xff]
    %v39 = vld [vmem:[#allocation5 + $0x8] sm:$0xff]
    %v40 = vld [vmem:[#allocation5 + $0x10] sm:$0xff]
    %v41 = vld [vmem:[#allocation5 + $0x18] sm:$0xff]
    %v42 = vld [vmem:[#allocation5 + $0x20] sm:$0xff]
    %v43 = vld [vmem:[#allocation5 + $0x28] sm:$0xff]
    %v44 = vld [vmem:[#allocation5 + $0x30] sm:$0xff]
    %v45 = vld [vmem:[#allocation5 + $0x38] sm:$0xff]
    %v49 = vunpack.c.l.s4 1966171168
    %v50 = vunpack.c.0.s8 %v49
    %v51 = vlaneseq
    %v52 = vshrl.u32 %v51, 7
    %v53 = vsub.s32 %v50, %v52
    %v54 = vrot.slane %v36, %v53
    %v56 = vunpack.c.l.s4 1966171168
    %v57 = vunpack.c.0.s8 %v56
    %v58 = vlaneseq
    %v59 = vshrl.u32 %v58, 7
    %v60 = vsub.s32 %v57, %v59
    %v61 = vrot.slane %v37, %v60
    %v62 = vcombine.low %v54, %v61
    %v63 = vcombine.high %v54, %v61
    %v64 = vlaneseq
    %v65 = vshrl.u32 %v64, 7
    %v66 = vsub.s32 0, %v65
    %v67 = vrot.slane %v62, %v66
    %v68 = vlaneseq
    %v69 = vshrl.u32 %v68, 7
    %v70 = vsub.s32 1, %v69
    %v71 = vrot.slane %v62, %v70
    %v72 = vlaneseq
    %v73 = vshrl.u32 %v72, 7
    %v74 = vsub.s32 2, %v73
    %v75 = vrot.slane %v62, %v74
    %v76 = vlaneseq
    %v77 = vshrl.u32 %v76, 7
    %v78 = vsub.s32 3, %v77
    %v79 = vrot.slane %v62, %v78
    %v80 = vlaneseq
    %v81 = vshrl.u32 %v80, 7
    %v82 = vsub.s32 4, %v81
    %v83 = vrot.slane %v62, %v82
    %v84 = vlaneseq
    %v85 = vshrl.u32 %v84, 7
    %v86 = vsub.s32 5, %v85
    %v87 = vrot.slane %v62, %v86
    %v88 = vlaneseq
    %v89 = vshrl.u32 %v88, 7
    %v90 = vsub.s32 6, %v89
    %v91 = vrot.slane %v62, %v90
    %v92 = vlaneseq
    %v93 = vshrl.u32 %v92, 7
    %v94 = vsub.s32 7, %v93
    %v95 = vrot.slane %v62, %v94
    %v96 = vlaneseq
    %v97 = vshrl.u32 %v96, 7
    %v98 = vsub.s32 0, %v97
    %v99 = vrot.slane %v63, %v98
    %v100 = vlaneseq
    %v101 = vshrl.u32 %v100, 7
    %v102 = vsub.s32 1, %v101
    %v103 = vrot.slane %v63, %v102
    %v104 = vlaneseq
    %v105 = vshrl.u32 %v104, 7
    %v106 = vsub.s32 2, %v105
    %v107 = vrot.slane %v63, %v106
    %v108 = vlaneseq
    %v109 = vshrl.u32 %v108, 7
    %v110 = vsub.s32 3, %v109
    %v111 = vrot.slane %v63, %v110
    %v112 = vlaneseq
    %v113 = vshrl.u32 %v112, 7
    %v114 = vsub.s32 4, %v113
    %v115 = vrot.slane %v63, %v114
    %v116 = vlaneseq
    %v117 = vshrl.u32 %v116, 7
    %v118 = vsub.s32 5, %v117
    %v119 = vrot.slane %v63, %v118
    %v120 = vlaneseq
    %v121 = vshrl.u32 %v120, 7
    %v122 = vsub.s32 6, %v121
    %v123 = vrot.slane %v63, %v122
    %v124 = vlaneseq
    %v125 = vshrl.u32 %v124, 7
    %v126 = vsub.s32 7, %v125
    %v127 = vrot.slane %v63, %v126
    %v144 = vmul.f32 %v67, %v38
    %v145 = vmul.f32 %v71, %v39
    %v146 = vmul.f32 %v75, %v40
    %v147 = vmul.f32 %v79, %v41
    %v148 = vmul.f32 %v83, %v42
    %v149 = vmul.f32 %v87, %v43
    %v150 = vmul.f32 %v91, %v44
    %v151 = vmul.f32 %v95, %v45
    %v152 = vmul.f32 %v99, %v38
    %v153 = vmul.f32 %v103, %v39
    %v154 = vmul.f32 %v107, %v40
    %v155 = vmul.f32 %v111, %v41
    %v156 = vmul.f32 %v115, %v42
    %v157 = vmul.f32 %v119, %v43
    %v158 = vmul.f32 %v123, %v44
    %v159 = vmul.f32 %v127, %v45
    %160 = vst [vmem:[#allocation7] sm:$0xff] %v144
    %161 = vst [vmem:[#allocation7 + $0x8] sm:$0xff] %v145
    %162 = vst [vmem:[#allocation7 + $0x10] sm:$0xff] %v146
    %163 = vst [vmem:[#allocation7 + $0x18] sm:$0xff] %v147
    %164 = vst [vmem:[#allocation7 + $0x20] sm:$0xff] %v148
    %165 = vst [vmem:[#allocation7 + $0x28] sm:$0xff] %v149
    %166 = vst [vmem:[#allocation7 + $0x30] sm:$0xff] %v150
    %167 = vst [vmem:[#allocation7 + $0x38] sm:$0xff] %v151
    %168 = vst [vmem:[#allocation7 + $0x40] sm:$0xff] %v152
    %169 = vst [vmem:[#allocation7 + $0x48] sm:$0xff] %v153
    %170 = vst [vmem:[#allocation7 + $0x50] sm:$0xff] %v154
    %171 = vst [vmem:[#allocation7 + $0x58] sm:$0xff] %v155
    %172 = vst [vmem:[#allocation7 + $0x60] sm:$0xff] %v156
    %173 = vst [vmem:[#allocation7 + $0x68] sm:$0xff] %v157
    %174 = vst [vmem:[#allocation7 + $0x70] sm:$0xff] %v158
    %175 = vst [vmem:[#allocation7 + $0x78] sm:$0xff] %v159
    // Predicated region
    $region18: #{tpu_custom_call.1} parent=1 // pred_check
      _
    $region19: #{tpu_custom_call.1} parent=1 // pred_check_branch
      %177 = sbr.rel (0) target = $region21
    $region20: #{tpu_custom_call.1} parent=1 // pred_region
      %s179 = ssub.s32 2048, 2048
      %180 = vsyncadd [#allocation4], %s179
      %s181 = sshll.u32 [#allocation7], 4
      %s182 = int_to_ptr.vmem [resolvable:$true] %s181
      %187 = dma.vmem_to_hbm [thread:$0]  %s182, 2048, %s2, [#allocation4], 1024, 1024, 64
    $region21: #{tpu_custom_call.1} parent=1 // pred_fallthru
      _
    // Predicated region
    $region22: #{tpu_custom_call.1} parent=1 // pred_check
      _
    $region23: #{tpu_custom_call.1} parent=1 // pred_check_branch
      %189 = sbr.rel (0) target = $region25
    $region24: #{tpu_custom_call.1} parent=1 // pred_region
      %190 = dma.done [#allocation4], 2048
    $region25: #{tpu_custom_call.1} parent=1 // pred_fallthru
      _
    %191 = vsyncpa [#allocation3], 1
    %192 = vsyncpa [#allocation6], 1
    %193 = vsyncpa [#allocation4], 1

</llo_original>
